<compile_context>
chip_gen: v6e
topology: v6e:2x2x1
jax: 0.10.0
libtpu: 0.0.40
codegen_flags: <defaults>
</compile_context>

<pallas_src>
import math

import jax
import jax.numpy as jnp
from jax.experimental import pallas as pl
from jax.experimental.pallas import tpu as pltpu

H_IN = 512
H1 = 64
H2 = 32
H_OUT = 2
LANES = 128                       # lane-dense working width
W_SLAB_ROWS = H_IN + 2 * LANES    # 512 + 128 + 128 = 768 (layer-3 mu/std fused)
N_BIAS_ROWS = 3
BLOCK_ROWS = 128                  # per-grid-step matmul M

_LOG_2PI = math.log(2.0 * math.pi)


def _location_kernel(h_ref, eps_ref, w_ref, b_ref, out_ref):
    f32 = jnp.float32
    bf16 = jnp.bfloat16

    # ---- weight slab (bf16, MXU operands only); VMEM-resident across grid steps ----
    w1 = w_ref[0:H_IN, :]                       # (512,128)  [wmu1 | wsd1]
    w2 = w_ref[H_IN:H_IN + LANES, :]            # (128,128)  block-diag(wmu2, wsd2)
    w3 = w_ref[H_IN + LANES:W_SLAB_ROWS, :]     # (128,128)  wmu3->cols 0:2, wsd3->cols 2:4

    bias = b_ref[...]                           # (3,128) f32
    b1 = bias[0:1, :]
    b2 = bias[1:2, :]
    b3 = bias[2:3, :]

    h = h_ref[...]                              # (TB,512) bf16

    # ---- fused mu/std MLP: 3 lane-dense MXU matmuls, f32 accumulation ----
    x1 = jnp.tanh(jnp.dot(h, w1, preferred_element_type=f32) + b1)             # (TB,128)
    x2 = jnp.tanh(jnp.dot(x1.astype(bf16), w2, preferred_element_type=f32) + b2)
    z3 = jnp.dot(x2.astype(bf16), w3, preferred_element_type=f32) + b3         # (TB,128)
    # z3: lanes 0:2 = mean pre-activation, lanes 2:4 = log_std, lanes >=4 = 0.
    mean = jnp.tanh(z3)
    log_std = pltpu.roll(z3, LANES - H_OUT, axis=1)    # roll by -2: log_std -> lanes 0:2
    std = jnp.exp(log_std)

    lane = jax.lax.broadcasted_iota(jnp.int32, z3.shape, 1)
    valid = lane < H_OUT

    # ---- widen eps (TB,2) -> (TB,128): noise in lanes 0:2, zeros elsewhere ----
    e = eps_ref[...].astype(f32)
    eps = (jnp.where(lane == 0, e[:, 0:1], 0.0)
           + jnp.where(lane == 1, e[:, 1:2], 0.0))

    # ---- reparameterized sample, log_prob, entropy (pre-tanh Normal; matches torch) ----
    x_t = mean + std * eps
    l_t = jnp.tanh(x_t)

    # x_t - mean == std * eps exactly => quadratic term is -0.5 * eps^2
    lp = jnp.where(valid, -0.5 * eps * eps - log_std - 0.5 * _LOG_2PI, 0.0)
    ent = jnp.where(valid, 0.5 + 0.5 * _LOG_2PI + log_std, 0.0)
    log_pi = jnp.sum(lp, axis=1, keepdims=True)        # (TB,1)
    entropy = jnp.sum(ent, axis=1, keepdims=True)      # (TB,1)

    # ---- single lane-dense output slab ----
    #   lanes 0:2 tanh(x_t), 2 log_pi, 3 entropy, 4:6 mean, rest 0
    mean_at_4 = pltpu.roll(jnp.where(valid, mean, 0.0), 2 * H_OUT, axis=1)
    out_ref[...] = (jnp.where(valid, l_t, 0.0)
                    + jnp.where(lane == H_OUT, log_pi, 0.0)
                    + jnp.where(lane == H_OUT + 1, entropy, 0.0)
                    + mean_at_4)


def pack_params(params):
    """Fuse the six Linear layers into one bf16 weight slab and one f32 bias slab."""
    f32 = jnp.float32

    w1 = jnp.concatenate([params["wmu1"], params["wsd1"]], axis=1)          # (512,128)
    b1 = jnp.concatenate([params["bmu1"], params["bsd1"]], axis=0)          # (128,)

    w2 = jnp.zeros((LANES, LANES), f32)
    w2 = w2.at[0:H1, 0:H2].set(params["wmu2"])
    w2 = w2.at[H1:2 * H1, H2:2 * H2].set(params["wsd2"])
    b2 = jnp.zeros((LANES,), f32)
    b2 = b2.at[0:H2].set(params["bmu2"]).at[H2:2 * H2].set(params["bsd2"])

    # Fused layer 3: mu features (lanes 0:32) -> cols 0:2, std features (lanes 32:64) -> cols 2:4.
    w3 = jnp.zeros((LANES, LANES), f32)
    w3 = w3.at[0:H2, 0:H_OUT].set(params["wmu3"])
    w3 = w3.at[H2:2 * H2, H_OUT:2 * H_OUT].set(params["wsd3"])
    b3 = jnp.zeros((LANES,), f32)
    b3 = b3.at[0:H_OUT].set(params["bmu3"]).at[H_OUT:2 * H_OUT].set(params["bsd3"])

    w_slab = jnp.concatenate([w1, w2, w3], axis=0).astype(jnp.bfloat16)     # (768,128)
    b_slab = jnp.stack([b1, b2, b3], axis=0)                                # (3,128) f32
    return w_slab, b_slab


def location_network_forward(h_t, packed, eps, *, is_test=False, block_rows=BLOCK_ROWS):
    """Returns (log_pi (B,), action (B,2), entropy_pi (B,)) like the torch module."""
    w_slab, b_slab = packed
    B = h_t.shape[0]

    # Pad rows to a multiple of 16 (bf16 sublane packing); for large batches, pad to a
    # multiple of block_rows and stream chunks over the grid (MXU M = 128 per step).
    Bp = ((B + 15) // 16) * 16
    if Bp > block_rows:
        Bp = ((Bp + block_rows - 1) // block_rows) * block_rows
        tb = block_rows
    else:
        tb = Bp
    n_steps = Bp // tb

    h = h_t.astype(jnp.bfloat16)            # bf16 at the boundary: h is only an MXU LHS
    eps_f = eps.astype(jnp.float32)
    if Bp != B:
        h = jnp.pad(h, ((0, Bp - B), (0, 0)))
        eps_f = jnp.pad(eps_f, ((0, Bp - B), (0, 0)))

    flops = 2 * Bp * (H_IN * LANES + 2 * LANES * LANES)
    transcendentals = 5 * Bp * LANES
    bytes_accessed = (W_SLAB_ROWS * LANES * 2 + N_BIAS_ROWS * LANES * 4   # weights/bias once
                      + Bp * H_IN * 2 + Bp * H_OUT * 4 + Bp * LANES * 4)  # streamed h/eps/out

    out = pl.pallas_call(
        _location_kernel,
        out_shape=jax.ShapeDtypeStruct((Bp, LANES), jnp.float32),
        grid=(n_steps,),
        in_specs=[
            pl.BlockSpec((tb, H_IN), lambda i: (i, 0)),             # h: streamed
            pl.BlockSpec((tb, H_OUT), lambda i: (i, 0)),            # eps: streamed (compact)
            pl.BlockSpec((W_SLAB_ROWS, LANES), lambda i: (0, 0)),   # weights: fetched once
            pl.BlockSpec((N_BIAS_ROWS, LANES), lambda i: (0, 0)),   # biases: fetched once
        ],
        out_specs=pl.BlockSpec((tb, LANES), lambda i: (i, 0)),
        compiler_params=pltpu.CompilerParams(
            dimension_semantics=("parallel",),      # batch chunks independent (v7x megacore)
            vmem_limit_bytes=8 * 1024 * 1024),
        cost_estimate=pl.CostEstimate(
            flops=flops, transcendentals=transcendentals,
            bytes_accessed=bytes_accessed),
    )(h, eps_f, w_slab, b_slab)

    action = out[:B, 2 * H_OUT:3 * H_OUT] if is_test else out[:B, 0:H_OUT]
    log_pi = out[:B, H_OUT]
    entropy = out[:B, H_OUT + 1]
    return log_pi, action, entropy


def init_params(key):
    """Deterministic PyTorch-Linear-style (kaiming-uniform bound) init."""
    def linear(k, fan_in, fan_out):
        kw, kb = jax.random.split(k)
        bound = 1.0 / math.sqrt(fan_in)
        w = jax.random.uniform(kw, (fan_in, fan_out), jnp.float32, -bound, bound)
        b = jax.random.uniform(kb, (fan_out,), jnp.float32, -bound, bound)
        return w, b

    keys = jax.random.split(key, 6)
    p = {}
    p["wmu1"], p["bmu1"] = linear(keys[0], H_IN, H1)
    p["wmu2"], p["bmu2"] = linear(keys[1], H1, H2)
    p["wmu3"], p["bmu3"] = linear(keys[2], H2, H_OUT)
    p["wsd1"], p["bsd1"] = linear(keys[3], H_IN, H1)
    p["wsd2"], p["bsd2"] = linear(keys[4], H1, H2)
    p["wsd3"], p["bsd3"] = linear(keys[5], H2, H_OUT)
    return p


def reference_forward(h_t, params, eps):
    """Pure-JAX f32 reference of the torch module's forward."""
    m = jnp.tanh(h_t @ params["wmu1"] + params["bmu1"])
    m = jnp.tanh(m @ params["wmu2"] + params["bmu2"])
    mean = jnp.tanh(m @ params["wmu3"] + params["bmu3"])
    s = jnp.tanh(h_t @ params["wsd1"] + params["bsd1"])
    s = jnp.tanh(s @ params["wsd2"] + params["bsd2"])
    z = s @ params["wsd3"] + params["bsd3"]
    std = jnp.exp(z)
    x_t = mean + std * eps
    l_t = jnp.tanh(x_t)
    log_prob = -0.5 * ((x_t - mean) / std) ** 2 - z - 0.5 * _LOG_2PI
    log_pi = jnp.sum(log_prob, axis=1)
    entropy = jnp.sum(0.5 + 0.5 * _LOG_2PI + z, axis=1)
    return log_pi, l_t, entropy, mean


if __name__ == "__main__":
    key = jax.random.PRNGKey(0)
    k_param, k_h, k_eps = jax.random.split(key, 3)

    params = init_params(k_param)
    packed = pack_params(params)

    # Small single-block case and a multi-grid-step / MXU-row-occupancy case.
    for B in (4, 200):
        kh = jax.random.fold_in(k_h, B)
        ke = jax.random.fold_in(k_eps, B)
        h_t = jax.random.normal(kh, (B, H_IN), jnp.float32)
        eps = jax.random.normal(ke, (B, H_OUT), jnp.float32)    # rsample noise

        log_pi, action, entropy_pi = location_network_forward(h_t, packed, eps)
        jax.block_until_ready((log_pi, action, entropy_pi))

        assert log_pi.shape == (B,)
        assert action.shape == (B, H_OUT)
        assert entropy_pi.shape == (B,)
        assert bool(jnp.all(jnp.isfinite(log_pi)))
        assert bool(jnp.all(jnp.isfinite(entropy_pi)))
        assert bool(jnp.all(jnp.abs(action) <= 1.0))

        # Loose tolerance: kernel uses bf16 MXU operands, reference is pure f32.
        ref_lp, ref_act, ref_ent, ref_mean = reference_forward(h_t, params, eps)
        assert bool(jnp.allclose(action, ref_act, atol=2.5e-1, rtol=1e-1))
        assert bool(jnp.allclose(log_pi, ref_lp, atol=2.5e-1, rtol=1e-1))
        assert bool(jnp.allclose(entropy_pi, ref_ent, atol=2.5e-1, rtol=1e-1))

        # is_test path: action = mean (module's eval mode).
        _, action_test, _ = location_network_forward(h_t, packed, eps, is_test=True)
        jax.block_until_ready(action_test)
        assert action_test.shape == (B, H_OUT)
        assert bool(jnp.allclose(action_test, ref_mean, atol=2.5e-1, rtol=1e-1))

    print("KERNEL_OK")
</pallas_src>

<mosaic_0001>
module attributes {stable_mosaic.version = 11 : i64} {
  func.func @_location_kernel(%arg0: i32, %arg1: memref<16x512xbf16, #tpu.memory_space<vmem>>, %arg2: memref<16x2xf32, #tpu.memory_space<vmem>>, %arg3: memref<768x128xbf16, #tpu.memory_space<vmem>>, %arg4: memref<3x128xf32, #tpu.memory_space<vmem>>, %arg5: memref<16x128xf32, #tpu.memory_space<vmem>>) attributes {dimension_semantics = [#tpu.dimension_semantics<parallel>], iteration_bounds = array<i64: 1>, scalar_prefetch = 0 : i64, scratch_operands = 0 : i64, tpu.core_type = #tpu.core_type<tc>, window_params = [{transform_indices = @transform_0, window_bounds = array<i64: 16, 512>}, {transform_indices = @transform_1, window_bounds = array<i64: 16, 2>}, {pipeline_mode = #tpu.pipeline_mode<synchronous>, transform_indices = @transform_2, window_bounds = array<i64: 768, 128>}, {pipeline_mode = #tpu.pipeline_mode<synchronous>, transform_indices = @transform_3, window_bounds = array<i64: 3, 128>}, {transform_indices = @transform_4, window_bounds = array<i64: 16, 128>}]} {
    %c0 = arith.constant 0 : index
    %c0_0 = arith.constant 0 : index
    %0 = vector.load %arg3[%c0, %c0_0] : memref<768x128xbf16, #tpu.memory_space<vmem>>, vector<512x128xbf16>
    %c512 = arith.constant 512 : index
    %c0_1 = arith.constant 0 : index
    %1 = vector.load %arg3[%c512, %c0_1] : memref<768x128xbf16, #tpu.memory_space<vmem>>, vector<128x128xbf16>
    %c640 = arith.constant 640 : index
    %c0_2 = arith.constant 0 : index
    %2 = vector.load %arg3[%c640, %c0_2] : memref<768x128xbf16, #tpu.memory_space<vmem>>, vector<128x128xbf16>
    %c0_3 = arith.constant 0 : index
    %c0_4 = arith.constant 0 : index
    %3 = vector.load %arg4[%c0_3, %c0_4] : memref<3x128xf32, #tpu.memory_space<vmem>>, vector<3x128xf32>
    %4 = vector.extract_strided_slice %3 {offsets = [0, 0], sizes = [1, 128], strides = [1, 1]} : vector<3x128xf32> to vector<1x128xf32>
    %5 = vector.extract_strided_slice %3 {offsets = [1, 0], sizes = [1, 128], strides = [1, 1]} : vector<3x128xf32> to vector<1x128xf32>
    %6 = vector.extract_strided_slice %3 {offsets = [2, 0], sizes = [1, 128], strides = [1, 1]} : vector<3x128xf32> to vector<1x128xf32>
    %c0_5 = arith.constant 0 : index
    %c0_6 = arith.constant 0 : index
    %7 = vector.load %arg1[%c0_5, %c0_6] : memref<16x512xbf16, #tpu.memory_space<vmem>>, vector<16x512xbf16>
    %cst = arith.constant dense<0.000000e+00> : vector<16x128xf32>
    %8 = tpu.matmul %7, %0, %cst {dimension_numbers = #tpu.dot_dimension_numbers<[1], [0], [0], [1], [0, 0, 1, 1], [], []>} : vector<16x512xbf16>, vector<512x128xbf16>, vector<16x128xf32> -> vector<16x128xf32>
    %9 = vector.broadcast %4 : vector<1x128xf32> to vector<16x128xf32>
    %10 = arith.addf %8, %9 : vector<16x128xf32>
    %11 = math.tanh %10 : vector<16x128xf32>
    %12 = arith.truncf %11 : vector<16x128xf32> to vector<16x128xbf16>
    %cst_7 = arith.constant dense<0.000000e+00> : vector<16x128xf32>
    %13 = tpu.matmul %12, %1, %cst_7 {dimension_numbers = #tpu.dot_dimension_numbers<[1], [0], [0], [1], [0, 0, 1, 1], [], []>} : vector<16x128xbf16>, vector<128x128xbf16>, vector<16x128xf32> -> vector<16x128xf32>
    %14 = vector.broadcast %5 : vector<1x128xf32> to vector<16x128xf32>
    %15 = arith.addf %13, %14 : vector<16x128xf32>
    %16 = math.tanh %15 : vector<16x128xf32>
    %17 = arith.truncf %16 : vector<16x128xf32> to vector<16x128xbf16>
    %cst_8 = arith.constant dense<0.000000e+00> : vector<16x128xf32>
    %18 = tpu.matmul %17, %2, %cst_8 {dimension_numbers = #tpu.dot_dimension_numbers<[1], [0], [0], [1], [0, 0, 1, 1], [], []>} : vector<16x128xbf16>, vector<128x128xbf16>, vector<16x128xf32> -> vector<16x128xf32>
    %19 = vector.broadcast %6 : vector<1x128xf32> to vector<16x128xf32>
    %20 = arith.addf %18, %19 : vector<16x128xf32>
    %21 = math.tanh %20 : vector<16x128xf32>
    %c126_i32 = arith.constant 126 : i32
    %22 = tpu.dynamic_rotate %20 by %c126_i32 dim 1 : vector<16x128xf32>, i32 -> vector<16x128xf32>
    %23 = math.exp %22 : vector<16x128xf32>
    %24 = tpu.iota {dimensions = array<i32: 1>} : vector<16x128xi32>
    %c2_i32 = arith.constant 2 : i32
    %25 = vector.broadcast %c2_i32 : i32 to vector<16x128xi32>
    %26 = arith.cmpi slt, %24, %25 : vector<16x128xi32>
    %c0_9 = arith.constant 0 : index
    %c0_10 = arith.constant 0 : index
    %27 = vector.load %arg2[%c0_9, %c0_10] : memref<16x2xf32, #tpu.memory_space<vmem>>, vector<16x2xf32>
    %c0_i32 = arith.constant 0 : i32
    %28 = vector.broadcast %c0_i32 : i32 to vector<16x128xi32>
    %29 = arith.cmpi eq, %24, %28 : vector<16x128xi32>
    %30 = vector.extract_strided_slice %27 {offsets = [0, 0], sizes = [16, 1], strides = [1, 1]} : vector<16x2xf32> to vector<16x1xf32>
    %cst_11 = arith.constant 0.000000e+00 : f32
    %31 = vector.shape_cast %30 : vector<16x1xf32> to vector<16x1xf32>
    %32 = vector.broadcast %31 : vector<16x1xf32> to vector<16x128xf32>
    %33 = vector.broadcast %cst_11 : f32 to vector<16x128xf32>
    %34 = arith.select %29, %32, %33 : vector<16x128xi1>, vector<16x128xf32>
    %c1_i32 = arith.constant 1 : i32
    %35 = vector.broadcast %c1_i32 : i32 to vector<16x128xi32>
    %36 = arith.cmpi eq, %24, %35 : vector<16x128xi32>
    %37 = vector.extract_strided_slice %27 {offsets = [0, 1], sizes = [16, 1], strides = [1, 1]} : vector<16x2xf32> to vector<16x1xf32>
    %cst_12 = arith.constant 0.000000e+00 : f32
    %38 = vector.shape_cast %37 : vector<16x1xf32> to vector<16x1xf32>
    %39 = vector.broadcast %38 : vector<16x1xf32> to vector<16x128xf32>
    %40 = vector.broadcast %cst_12 : f32 to vector<16x128xf32>
    %41 = arith.select %36, %39, %40 : vector<16x128xi1>, vector<16x128xf32>
    %42 = arith.addf %34, %41 : vector<16x128xf32>
    %43 = arith.mulf %23, %42 : vector<16x128xf32>
    %44 = arith.addf %21, %43 : vector<16x128xf32>
    %45 = math.tanh %44 : vector<16x128xf32>
    %cst_13 = arith.constant -5.000000e-01 : f32
    %46 = vector.broadcast %cst_13 : f32 to vector<16x128xf32>
    %47 = arith.mulf %46, %42 : vector<16x128xf32>
    %48 = arith.mulf %47, %42 : vector<16x128xf32>
    %49 = arith.subf %48, %22 : vector<16x128xf32>
    %cst_14 = arith.constant 0.918938517 : f32
    %50 = vector.broadcast %cst_14 : f32 to vector<16x128xf32>
    %51 = arith.subf %49, %50 : vector<16x128xf32>
    %cst_15 = arith.constant 0.000000e+00 : f32
    %52 = vector.broadcast %cst_15 : f32 to vector<16x128xf32>
    %53 = arith.select %26, %51, %52 : vector<16x128xi1>, vector<16x128xf32>
    %cst_16 = arith.constant 1.41893852 : f32
    %54 = vector.broadcast %cst_16 : f32 to vector<16x128xf32>
    %55 = arith.addf %54, %22 : vector<16x128xf32>
    %cst_17 = arith.constant 0.000000e+00 : f32
    %56 = vector.broadcast %cst_17 : f32 to vector<16x128xf32>
    %57 = arith.select %26, %55, %56 : vector<16x128xi1>, vector<16x128xf32>
    %cst_18 = arith.constant dense<0.000000e+00> : vector<16xf32>
    %58 = vector.multi_reduction <add>, %53, %cst_18 [1] : vector<16x128xf32> to vector<16xf32>
    %59 = vector.shape_cast %58 : vector<16xf32> to vector<16x1xf32>
    %cst_19 = arith.constant dense<0.000000e+00> : vector<16xf32>
    %60 = vector.multi_reduction <add>, %57, %cst_19 [1] : vector<16x128xf32> to vector<16xf32>
    %61 = vector.shape_cast %60 : vector<16xf32> to vector<16x1xf32>
    %cst_20 = arith.constant 0.000000e+00 : f32
    %62 = vector.broadcast %cst_20 : f32 to vector<16x128xf32>
    %63 = arith.select %26, %21, %62 : vector<16x128xi1>, vector<16x128xf32>
    %c4_i32 = arith.constant 4 : i32
    %64 = tpu.dynamic_rotate %63 by %c4_i32 dim 1 : vector<16x128xf32>, i32 -> vector<16x128xf32>
    %cst_21 = arith.constant 0.000000e+00 : f32
    %65 = vector.broadcast %cst_21 : f32 to vector<16x128xf32>
    %66 = arith.select %26, %45, %65 : vector<16x128xi1>, vector<16x128xf32>
    %c2_i32_22 = arith.constant 2 : i32
    %67 = vector.broadcast %c2_i32_22 : i32 to vector<16x128xi32>
    %68 = arith.cmpi eq, %24, %67 : vector<16x128xi32>
    %cst_23 = arith.constant 0.000000e+00 : f32
    %69 = vector.shape_cast %59 : vector<16x1xf32> to vector<16x1xf32>
    %70 = vector.broadcast %69 : vector<16x1xf32> to vector<16x128xf32>
    %71 = vector.broadcast %cst_23 : f32 to vector<16x128xf32>
    %72 = arith.select %68, %70, %71 : vector<16x128xi1>, vector<16x128xf32>
    %73 = arith.addf %66, %72 : vector<16x128xf32>
    %c3_i32 = arith.constant 3 : i32
    %74 = vector.broadcast %c3_i32 : i32 to vector<16x128xi32>
    %75 = arith.cmpi eq, %24, %74 : vector<16x128xi32>
    %cst_24 = arith.constant 0.000000e+00 : f32
    %76 = vector.shape_cast %61 : vector<16x1xf32> to vector<16x1xf32>
    %77 = vector.broadcast %76 : vector<16x1xf32> to vector<16x128xf32>
    %78 = vector.broadcast %cst_24 : f32 to vector<16x128xf32>
    %79 = arith.select %75, %77, %78 : vector<16x128xi1>, vector<16x128xf32>
    %80 = arith.addf %73, %79 : vector<16x128xf32>
    %81 = arith.addf %80, %64 : vector<16x128xf32>
    %c0_25 = arith.constant 0 : index
    %c0_26 = arith.constant 0 : index
    %82 = vector.load %arg5[%c0_25, %c0_26] : memref<16x128xf32, #tpu.memory_space<vmem>>, vector<16x128xf32>
    tpu.vector_store %arg5[%c0_25, %c0_26], %81 {strides = array<i32>} : memref<16x128xf32, #tpu.memory_space<vmem>>, vector<16x128xf32>,
    return
  }
  func.func @transform_0(%arg0: i32) -> (i32, i32) {
    %c0_i32 = arith.constant 0 : i32
    %c0_i32_0 = arith.constant 0 : i32
    return %arg0, %c0_i32 : i32, i32
  }
  func.func @transform_1(%arg0: i32) -> (i32, i32) {
    %c0_i32 = arith.constant 0 : i32
    %c0_i32_0 = arith.constant 0 : i32
    return %arg0, %c0_i32 : i32, i32
  }
  func.func @transform_2(%arg0: i32) -> (i32, i32) {
    %c0_i32 = arith.constant 0 : i32
    %c0_i32_0 = arith.constant 0 : i32
    %c0_i32_1 = arith.constant 0 : i32
    return %c0_i32, %c0_i32_0 : i32, i32
  }
  func.func @transform_3(%arg0: i32) -> (i32, i32) {
    %c0_i32 = arith.constant 0 : i32
    %c0_i32_0 = arith.constant 0 : i32
    %c0_i32_1 = arith.constant 0 : i32
    return %c0_i32, %c0_i32_0 : i32, i32
  }
  func.func @transform_4(%arg0: i32) -> (i32, i32) {
    %c0_i32 = arith.constant 0 : i32
    %c0_i32_0 = arith.constant 0 : i32
    return %arg0, %c0_i32 : i32, i32
  }
}

</mosaic_0001>

<llo_original>
// kernel: tpu_custom_call.1
$region0: #{tpu_custom_call.1}
  #allocation0 [shape = 'u32[]', space=smem, size = 0x4, offset = 0x4, fixed_abs, tag = 'smem constant byte address 0x4 - core index']
  #allocation1 [shape = 'u32[144,128]{1,0:T(1,128)}', space=vmem, size = 0x12000, scoped, tag = 'internal scratch']
  %s0 = inlined_call_operand.hbm [shape: bf16[16,512], index: 0, kind: input, shape index: {}]
  %s1 = inlined_call_operand.vmem [shape: f32[16,2], index: 1, kind: input, shape index: {}]
  %s2 = inlined_call_operand.hbm [shape: bf16[768,128], index: 2, kind: input, shape index: {}]
  %s3 = inlined_call_operand.vmem [shape: f32[3,128], index: 3, kind: input, shape index: {}]
  %s4 = inlined_call_operand.hbm [shape: f32[16,128], index: 4, kind: output, shape index: {}]
  %s5 = sld [smem:[#allocation0]]
  $region34: #{tpu_custom_call.1} parent=0
    _
  %s7 = ssub.s32 1, %s5
  %s8 = scalar_select 0, %s7, %s5
  $region1: #{tpu_custom_call.1} parent=0
    #allocation2 [shape = 'u8[16384]{0}', space=vmem, size = 0x4000, scoped, tag = 'input window, operand 0, single buffered']
    #allocation3 [shape = 's32[1]{0}', space=sflag, size = 0x4, scoped, tag = 'scoped memory for tpu_custom_call.1']
    #allocation4 [shape = 's32[1]{0}', space=sflag, size = 0x4, scoped, tag = 'scoped memory for tpu_custom_call.1']
    #allocation5 [shape = 'u8[196608]{0}', space=vmem, size = 0x30000, scoped, tag = 'input window, operand 2, single buffered']
    #allocation6 [shape = 's32[1]{0}', space=sflag, size = 0x4, scoped, tag = 'scoped memory for tpu_custom_call.1']
    #allocation7 [shape = 'u8[8192]{0}', space=vmem, size = 0x2000, scoped, tag = 'output window, operand 0, single buffered']
    %9 = vsyncpa [#allocation3], 0
    %10 = vsyncpa [#allocation6], 0
    %11 = vsyncpa [#allocation4], 0
    // Predicated region
    $region2: #{tpu_custom_call.1} parent=1 // pred_check
      _
    $region3: #{tpu_custom_call.1} parent=1 // pred_check_branch
      %13 = sbr.rel (0) target = $region5
    $region4: #{tpu_custom_call.1} parent=1 // pred_region
      %s15 = ssub.s32 512, 512
      %16 = vsyncadd [#allocation3], %s15
      %s17 = sshll.u32 [#allocation2], 4
      %s18 = int_to_ptr.vmem [resolvable:$true] %s17
      %23 = dma.hbm_to_vmem [thread:$0]  %s0, 512, %s18, [#allocation3], 256, 256, 16
    $region5: #{tpu_custom_call.1} parent=1 // pred_fallthru
      _
    // Predicated region
    $region6: #{tpu_custom_call.1} parent=1 // pred_check
      _
    $region7: #{tpu_custom_call.1} parent=1 // pred_check_branch
      %25 = sbr.rel (0) target = $region9
    $region8: #{tpu_custom_call.1} parent=1 // pred_region
      _
    $region9: #{tpu_custom_call.1} parent=1 // pred_fallthru
      _
    // Predicated region
    $region10: #{tpu_custom_call.1} parent=1 // pred_check
      _
    $region11: #{tpu_custom_call.1} parent=1 // pred_check_branch
      %27 = sbr.rel (0) target = $region13
    $region12: #{tpu_custom_call.1} parent=1 // pred_region
      %s29 = ssub.s32 6144, 6144
      %30 = vsyncadd [#allocation6], %s29
      %s31 = sshll.u32 [#allocation5], 4
      %s32 = int_to_ptr.vmem [resolvable:$true] %s31
      %37 = dma.hbm_to_vmem [thread:$0]  %s2, 6144, %s32, [#allocation6], 64, 64, 4
    $region13: #{tpu_custom_call.1} parent=1 // pred_fallthru
      _
    // Predicated region
    $region14: #{tpu_custom_call.1} parent=1 // pred_check
      _
    $region15: #{tpu_custom_call.1} parent=1 // pred_check_branch
      %39 = sbr.rel (0) target = $region17
    $region16: #{tpu_custom_call.1} parent=1 // pred_region
      _
    $region17: #{tpu_custom_call.1} parent=1 // pred_fallthru
      _
    // Predicated region
    $region18: #{tpu_custom_call.1} parent=1 // pred_check
      _
    $region19: #{tpu_custom_call.1} parent=1 // pred_check_branch
      %41 = sbr.rel (0) target = $region21
    $region20: #{tpu_custom_call.1} parent=1 // pred_region
      %42 = dma.done [#allocation3], 512
    $region21: #{tpu_custom_call.1} parent=1 // pred_fallthru
      _
    // Predicated region
    $region22: #{tpu_custom_call.1} parent=1 // pred_check
      _
    $region23: #{tpu_custom_call.1} parent=1 // pred_check_branch
      %44 = sbr.rel (0) target = $region25
    $region24: #{tpu_custom_call.1} parent=1 // pred_region
      %45 = dma.done [#allocation6], 6144
    $region25: #{tpu_custom_call.1} parent=1 // pred_fallthru
      _
    %v47 = vld [vmem:[#allocation5] sm:$0xf]
    %v48 = vld [vmem:[#allocation5 + $0x4] sm:$0xf]
    %v49 = vld [vmem:[#allocation5 + $0x8] sm:$0xf]
    %v50 = vld [vmem:[#allocation5 + $0xc] sm:$0xf]
    %v51 = vld [vmem:[#allocation5 + $0x10] sm:$0xf]
    %v52 = vld [vmem:[#allocation5 + $0x14] sm:$0xf]
    %v53 = vld [vmem:[#allocation5 + $0x18] sm:$0xf]
    %v54 = vld [vmem:[#allocation5 + $0x1c] sm:$0xf]
    %v55 = vld [vmem:[#allocation5 + $0x20] sm:$0xf]
    %v56 = vld [vmem:[#allocation5 + $0x24] sm:$0xf]
    %v57 = vld [vmem:[#allocation5 + $0x28] sm:$0xf]
    %v58 = vld [vmem:[#allocation5 + $0x2c] sm:$0xf]
    %v59 = vld [vmem:[#allocation5 + $0x30] sm:$0xf]
    %v60 = vld [vmem:[#allocation5 + $0x34] sm:$0xf]
    %v61 = vld [vmem:[#allocation5 + $0x38] sm:$0xf]
    %v62 = vld [vmem:[#allocation5 + $0x3c] sm:$0xf]
    %v63 = vld [vmem:[#allocation5 + $0x40] sm:$0xf]
    %v64 = vld [vmem:[#allocation5 + $0x44] sm:$0xf]
    %v65 = vld [vmem:[#allocation5 + $0x48] sm:$0xf]
    %v66 = vld [vmem:[#allocation5 + $0x4c] sm:$0xf]
    %v67 = vld [vmem:[#allocation5 + $0x50] sm:$0xf]
    %v68 = vld [vmem:[#allocation5 + $0x54] sm:$0xf]
    %v69 = vld [vmem:[#allocation5 + $0x58] sm:$0xf]
    %v70 = vld [vmem:[#allocation5 + $0x5c] sm:$0xf]
    %v71 = vld [vmem:[#allocation5 + $0x60] sm:$0xf]
    %v72 = vld [vmem:[#allocation5 + $0x64] sm:$0xf]
    %v73 = vld [vmem:[#allocation5 + $0x68] sm:$0xf]
    %v74 = vld [vmem:[#allocation5 + $0x6c] sm:$0xf]
    %v75 = vld [vmem:[#allocation5 + $0x70] sm:$0xf]
    %v76 = vld [vmem:[#allocation5 + $0x74] sm:$0xf]
    %v77 = vld [vmem:[#allocation5 + $0x78] sm:$0xf]
    %v78 = vld [vmem:[#allocation5 + $0x7c] sm:$0xf]
    %v79 = vld [vmem:[#allocation5 + $0x80] sm:$0xf]
    %v80 = vld [vmem:[#allocation5 + $0x84] sm:$0xf]
    %v81 = vld [vmem:[#allocation5 + $0x88] sm:$0xf]
    %v82 = vld [vmem:[#allocation5 + $0x8c] sm:$0xf]
    %v83 = vld [vmem:[#allocation5 + $0x90] sm:$0xf]
    %v84 = vld [vmem:[#allocation5 + $0x94] sm:$0xf]
    %v85 = vld [vmem:[#allocation5 + $0x98] sm:$0xf]
    %v86 = vld [vmem:[#allocation5 + $0x9c] sm:$0xf]
    %v87 = vld [vmem:[#allocation5 + $0xa0] sm:$0xf]
    %v88 = vld [vmem:[#allocation5 + $0xa4] sm:$0xf]
    %v89 = vld [vmem:[#allocation5 + $0xa8] sm:$0xf]
    %v90 = vld [vmem:[#allocation5 + $0xac] sm:$0xf]
    %v91 = vld [vmem:[#allocation5 + $0xb0] sm:$0xf]
    %v92 = vld [vmem:[#allocation5 + $0xb4] sm:$0xf]
    %v93 = vld [vmem:[#allocation5 + $0xb8] sm:$0xf]
    %v94 = vld [vmem:[#allocation5 + $0xbc] sm:$0xf]
    %v95 = vld [vmem:[#allocation5 + $0xc0] sm:$0xf]
    %v96 = vld [vmem:[#allocation5 + $0xc4] sm:$0xf]
    %v97 = vld [vmem:[#allocation5 + $0xc8] sm:$0xf]
    %v98 = vld [vmem:[#allocation5 + $0xcc] sm:$0xf]
    %v99 = vld [vmem:[#allocation5 + $0xd0] sm:$0xf]
    %v100 = vld [vmem:[#allocation5 + $0xd4] sm:$0xf]
    %v101 = vld [vmem:[#allocation5 + $0xd8] sm:$0xf]
    %v102 = vld [vmem:[#allocation5 + $0xdc] sm:$0xf]
    %v103 = vld [vmem:[#allocation5 + $0xe0] sm:$0xf]
    %v104 = vld [vmem:[#allocation5 + $0xe4] sm:$0xf]
    %v105 = vld [vmem:[#allocation5 + $0xe8] sm:$0xf]
    %v106 = vld [vmem:[#allocation5 + $0xec] sm:$0xf]
    %v107 = vld [vmem:[#allocation5 + $0xf0] sm:$0xf]
    %v108 = vld [vmem:[#allocation5 + $0xf4] sm:$0xf]
    %v109 = vld [vmem:[#allocation5 + $0xf8] sm:$0xf]
    %v110 = vld [vmem:[#allocation5 + $0xfc] sm:$0xf]
    %v111 = vld [vmem:[#allocation5 + $0x100] sm:$0xf]
    %v112 = vld [vmem:[#allocation5 + $0x104] sm:$0xf]
    %v113 = vld [vmem:[#allocation5 + $0x108] sm:$0xf]
    %v114 = vld [vmem:[#allocation5 + $0x10c] sm:$0xf]
    %v115 = vld [vmem:[#allocation5 + $0x110] sm:$0xf]
    %v116 = vld [vmem:[#allocation5 + $0x114] sm:$0xf]
    %v117 = vld [vmem:[#allocation5 + $0x118] sm:$0xf]
    %v118 = vld [vmem:[#allocation5 + $0x11c] sm:$0xf]
    %v119 = vld [vmem:[#allocation5 + $0x120] sm:$0xf]
    %v120 = vld [vmem:[#allocation5 + $0x124] sm:$0xf]
    %v121 = vld [vmem:[#allocation5 + $0x128] sm:$0xf]
    %v122 = vld [vmem:[#allocation5 + $0x12c] sm:$0xf]
    %v123 = vld [vmem:[#allocation5 + $0x130] sm:$0xf]
    %v124 = vld [vmem:[#allocation5 + $0x134] sm:$0xf]
    %v125 = vld [vmem:[#allocation5 + $0x138] sm:$0xf]
    %v126 = vld [vmem:[#allocation5 + $0x13c] sm:$0xf]
    %v127 = vld [vmem:[#allocation5 + $0x140] sm:$0xf]
    %v128 = vld [vmem:[#allocation5 + $0x144] sm:$0xf]
    %v129 = vld [vmem:[#allocation5 + $0x148] sm:$0xf]
    %v130 = vld [vmem:[#allocation5 + $0x14c] sm:$0xf]
    %v131 = vld [vmem:[#allocation5 + $0x150] sm:$0xf]
    %v132 = vld [vmem:[#allocation5 + $0x154] sm:$0xf]
    %v133 = vld [vmem:[#allocation5 + $0x158] sm:$0xf]
    %v134 = vld [vmem:[#allocation5 + $0x15c] sm:$0xf]
    %v135 = vld [vmem:[#allocation5 + $0x160] sm:$0xf]
    %v136 = vld [vmem:[#allocation5 + $0x164] sm:$0xf]
    %v137 = vld [vmem:[#allocation5 + $0x168] sm:$0xf]
    %v138 = vld [vmem:[#allocation5 + $0x16c] sm:$0xf]
    %v139 = vld [vmem:[#allocation5 + $0x170] sm:$0xf]
    %v140 = vld [vmem:[#allocation5 + $0x174] sm:$0xf]
    %v141 = vld [vmem:[#allocation5 + $0x178] sm:$0xf]
    %v142 = vld [vmem:[#allocation5 + $0x17c] sm:$0xf]
    %v143 = vld [vmem:[%s3] sm:$0x7]
    %v144 = vld [vmem:[#allocation2] sm:$0xff]
    %v145 = vld [vmem:[#allocation2 + $0x8] sm:$0xff]
    %v146 = vld [vmem:[#allocation2 + $0x10] sm:$0xff]
    %v147 = vld [vmem:[#allocation2 + $0x18] sm:$0xff]
    %v148 = vlaneseq
    %v149 = vshrl.u32 %v148, 7
    %v150 = vsub.s32 0, %v149
    %v151 = vrot.slane %v143, %v150
    %v156 = vunpack.c.l.b16 %v144
    %v157 = vunpack.c.h.b16 %v144
    %v158 = vunpack.c.l.b16 %v145
    %v159 = vunpack.c.h.b16 %v145
    %v160 = vunpack.c.l.b16 %v146
    %v161 = vunpack.c.h.b16 %v146
    %v162 = vunpack.c.l.b16 %v147
    %v163 = vunpack.c.h.b16 %v147
    %v164 = vpack.c.b16 %v160, %v156
    %v165 = vpack.c.b16 %v161, %v157
    %v166 = vpack.c.b16 %v162, %v158
    %v167 = vpack.c.b16 %v163, %v159
    %v236 = vunpack.c.l.b16 %v47
    %v237 = vunpack.c.l.b16 %v48
    %v238 = vunpack.c.l.b16 %v49
    %v239 = vunpack.c.l.b16 %v50
    %v240 = vunpack.c.l.b16 %v51
    %v241 = vunpack.c.l.b16 %v52
    %v242 = vunpack.c.l.b16 %v53
    %v243 = vunpack.c.l.b16 %v54
    %v244 = vunpack.c.l.b16 %v55
    %v245 = vunpack.c.l.b16 %v56
    %v246 = vunpack.c.l.b16 %v57
    %v247 = vunpack.c.l.b16 %v58
    %v248 = vunpack.c.l.b16 %v59
    %v249 = vunpack.c.l.b16 %v60
    %v250 = vunpack.c.l.b16 %v61
    %v251 = vunpack.c.l.b16 %v62
    %v252 = vunpack.c.l.b16 %v63
    %v253 = vunpack.c.l.b16 %v64
    %v254 = vunpack.c.l.b16 %v65
    %v255 = vunpack.c.l.b16 %v66
    %v256 = vunpack.c.l.b16 %v67
    %v257 = vunpack.c.l.b16 %v68
    %v258 = vunpack.c.l.b16 %v69
    %v259 = vunpack.c.l.b16 %v70
    %v260 = vunpack.c.l.b16 %v71
    %v261 = vunpack.c.l.b16 %v72
    %v262 = vunpack.c.l.b16 %v73
    %v263 = vunpack.c.l.b16 %v74
    %v264 = vunpack.c.l.b16 %v75
    %v265 = vunpack.c.l.b16 %v76
    %v266 = vunpack.c.l.b16 %v77
    %v267 = vunpack.c.l.b16 %v78
    %v268 = vunpack.c.l.b16 %v79
    %v269 = vunpack.c.l.b16 %v80
    %v270 = vunpack.c.l.b16 %v81
    %v271 = vunpack.c.l.b16 %v82
    %v272 = vunpack.c.l.b16 %v83
    %v273 = vunpack.c.l.b16 %v84
    %v274 = vunpack.c.l.b16 %v85
    %v275 = vunpack.c.l.b16 %v86
    %v276 = vunpack.c.l.b16 %v87
    %v277 = vunpack.c.l.b16 %v88
    %v278 = vunpack.c.l.b16 %v89
    %v279 = vunpack.c.l.b16 %v90
    %v280 = vunpack.c.l.b16 %v91
    %v281 = vunpack.c.l.b16 %v92
    %v282 = vunpack.c.l.b16 %v93
    %v283 = vunpack.c.l.b16 %v94
    %v284 = vunpack.c.l.b16 %v95
    %v285 = vunpack.c.l.b16 %v96
    %v286 = vunpack.c.l.b16 %v97
    %v287 = vunpack.c.l.b16 %v98
    %v288 = vunpack.c.l.b16 %v99
    %v289 = vunpack.c.l.b16 %v100
    %v290 = vunpack.c.l.b16 %v101
    %v291 = vunpack.c.l.b16 %v102
    %v292 = vunpack.c.l.b16 %v103
    %v293 = vunpack.c.l.b16 %v104
    %v294 = vunpack.c.l.b16 %v105
    %v295 = vunpack.c.l.b16 %v106
    %v296 = vunpack.c.l.b16 %v107
    %v297 = vunpack.c.l.b16 %v108
    %v298 = vunpack.c.l.b16 %v109
    %v299 = vunpack.c.l.b16 %v110
    %v300 = vpack.c.b16 %v237, %v236
    %v301 = vpack.c.b16 %v239, %v238
    %v302 = vpack.c.b16 %v241, %v240
    %v303 = vpack.c.b16 %v243, %v242
    %v304 = vpack.c.b16 %v245, %v244
    %v305 = vpack.c.b16 %v247, %v246
    %v306 = vpack.c.b16 %v249, %v248
    %v307 = vpack.c.b16 %v251, %v250
    %v308 = vpack.c.b16 %v253, %v252
    %v309 = vpack.c.b16 %v255, %v254
    %v310 = vpack.c.b16 %v257, %v256
    %v311 = vpack.c.b16 %v259, %v258
    %v312 = vpack.c.b16 %v261, %v260
    %v313 = vpack.c.b16 %v263, %v262
    %v314 = vpack.c.b16 %v265, %v264
    %v315 = vpack.c.b16 %v267, %v266
    %v316 = vpack.c.b16 %v269, %v268
    %v317 = vpack.c.b16 %v271, %v270
    %v318 = vpack.c.b16 %v273, %v272
    %v319 = vpack.c.b16 %v275, %v274
    %v320 = vpack.c.b16 %v277, %v276
    %v321 = vpack.c.b16 %v279, %v278
    %v322 = vpack.c.b16 %v281, %v280
    %v323 = vpack.c.b16 %v283, %v282
    %v324 = vpack.c.b16 %v285, %v284
    %v325 = vpack.c.b16 %v287, %v286
    %v326 = vpack.c.b16 %v289, %v288
    %v327 = vpack.c.b16 %v291, %v290
    %v328 = vpack.c.b16 %v293, %v292
    %v329 = vpack.c.b16 %v295, %v294
    %v330 = vpack.c.b16 %v297, %v296
    %v331 = vpack.c.b16 %v299, %v298
    %364 = vmatprep.subr.bf16.mxu0 0
    %365 = vmatpush1.bf16.msra.mxu0 %v307
    %366 = vmatprep.subr.bf16.mxu0 0
    %367 = vmatpush1.bf16.msra.mxu0 %v306
    %368 = vmatprep.subr.bf16.mxu0 0
    %369 = vmatpush1.bf16.msra.mxu0 %v305
    %370 = vmatprep.subr.bf16.mxu0 0
    %371 = vmatpush1.bf16.msra.mxu0 %v304
    %372 = vmatprep.subr.bf16.mxu0 0
    %373 = vmatpush1.bf16.msra.mxu0 %v303
    %374 = vmatprep.subr.bf16.mxu0 0
    %375 = vmatpush1.bf16.msra.mxu0 %v302
    %376 = vmatprep.subr.bf16.mxu0 0
    %377 = vmatpush1.bf16.msra.mxu0 %v301
    %378 = vmatprep.subr.bf16.mxu0 0
    %379 = vmatpush1.bf16.msra.mxu0 %v300
    %380 = vmatprep.subr.bf16.mxu0 0
    %381 = vmatpush2.bf16.msra.mxu0 %v315
    %382 = vmatprep.subr.bf16.mxu0 0
    %383 = vmatpush2.bf16.msra.mxu0 %v314
    %384 = vmatprep.subr.bf16.mxu0 0
    %385 = vmatpush2.bf16.msra.mxu0 %v313
    %386 = vmatprep.subr.bf16.mxu0 0
    %387 = vmatpush2.bf16.msra.mxu0 %v312
    %388 = vmatprep.subr.bf16.mxu0 0
    %389 = vmatpush2.bf16.msra.mxu0 %v311
    %390 = vmatprep.subr.bf16.mxu0 0
    %391 = vmatpush2.bf16.msra.mxu0 %v310
    %392 = vmatprep.subr.bf16.mxu0 0
    %393 = vmatpush2.bf16.msra.mxu0 %v309
    %394 = vmatprep.subr.bf16.mxu0 0
    %395 = vmatpush2.bf16.msra.mxu0 %v308
    %396 = vmatprep.mubr.bf16.mxu0 %v165
    %397 = vmatmul.mubr.bf16.gmra.mxu0 %v164
    %v398 = vpop.f32.mrf.mxu0
    %v399 = vadd.f32 %v151, %v398
    %v400 = vpop.f32.mrf.mxu0
    %v401 = vpop.f32.mrf.mxu0
    %v402 = vadd.f32 %v151, %v401
    %v403 = vpop.f32.mrf.mxu0
    %404 = vdwg.mxu0
    %405 = vmatprep.subr.bf16.mxu0 0
    %406 = vmatpush1.bf16.msra.mxu0 %v323
    %407 = vmatprep.subr.bf16.mxu0 0
    %408 = vmatpush1.bf16.msra.mxu0 %v322
    %409 = vmatprep.subr.bf16.mxu0 0
    %410 = vmatpush1.bf16.msra.mxu0 %v321
    %411 = vmatprep.subr.bf16.mxu0 0
    %412 = vmatpush1.bf16.msra.mxu0 %v320
    %413 = vmatprep.subr.bf16.mxu0 0
    %414 = vmatpush1.bf16.msra.mxu0 %v319
    %415 = vmatprep.subr.bf16.mxu0 0
    %416 = vmatpush1.bf16.msra.mxu0 %v318
    %417 = vmatprep.subr.bf16.mxu0 0
    %418 = vmatpush1.bf16.msra.mxu0 %v317
    %419 = vmatprep.subr.bf16.mxu0 0
    %420 = vmatpush1.bf16.msra.mxu0 %v316
    %421 = vmatprep.subr.bf16.mxu0 0
    %422 = vmatpush2.bf16.msra.mxu0 %v331
    %423 = vmatprep.subr.bf16.mxu0 0
    %424 = vmatpush2.bf16.msra.mxu0 %v330
    %425 = vmatprep.subr.bf16.mxu0 0
    %426 = vmatpush2.bf16.msra.mxu0 %v329
    %427 = vmatprep.subr.bf16.mxu0 0
    %428 = vmatpush2.bf16.msra.mxu0 %v328
    %429 = vmatprep.subr.bf16.mxu0 0
    %430 = vmatpush2.bf16.msra.mxu0 %v327
    %431 = vmatprep.subr.bf16.mxu0 0
    %432 = vmatpush2.bf16.msra.mxu0 %v326
    %433 = vmatprep.subr.bf16.mxu0 0
    %434 = vmatpush2.bf16.msra.mxu0 %v325
    %435 = vmatprep.subr.bf16.mxu0 0
    %436 = vmatpush2.bf16.msra.mxu0 %v324
    %437 = vmatprep.mubr.bf16.mxu0 %v167
    %438 = vmatmul.mubr.bf16.gmra.mxu0 %v166
    %v439 = vpop.f32.mrf.mxu0
    %v440 = vadd.f32 %v399, %v439
    %v441 = vpop.f32.mrf.mxu0
    %v442 = vpop.f32.mrf.mxu0
    %v443 = vadd.f32 %v402, %v442
    %v444 = vpop.f32.mrf.mxu0
    %445 = vdwg.mxu0
    %v446 = vtanh.pop %v440
    %v447 = vtanh.pop %v443
    %v448 = vpack.c.bf16 %v447, %v446
    %v449 = vlaneseq
    %v450 = vshrl.u32 %v449, 7
    %v451 = vsub.s32 1, %v450
    %v452 = vrot.slane %v143, %v451
    %v469 = vunpack.c.l.b16 %v111
    %v470 = vunpack.c.l.b16 %v112
    %v471 = vunpack.c.l.b16 %v113
    %v472 = vunpack.c.l.b16 %v114
    %v473 = vunpack.c.l.b16 %v115
    %v474 = vunpack.c.l.b16 %v116
    %v475 = vunpack.c.l.b16 %v117
    %v476 = vunpack.c.l.b16 %v118
    %v477 = vunpack.c.l.b16 %v119
    %v478 = vunpack.c.l.b16 %v120
    %v479 = vunpack.c.l.b16 %v121
    %v480 = vunpack.c.l.b16 %v122
    %v481 = vunpack.c.l.b16 %v123
    %v482 = vunpack.c.l.b16 %v124
    %v483 = vunpack.c.l.b16 %v125
    %v484 = vunpack.c.l.b16 %v126
    %v485 = vpack.c.b16 %v470, %v469
    %v486 = vpack.c.b16 %v472, %v471
    %v487 = vpack.c.b16 %v474, %v473
    %v488 = vpack.c.b16 %v476, %v475
    %v489 = vpack.c.b16 %v478, %v477
    %v490 = vpack.c.b16 %v480, %v479
    %v491 = vpack.c.b16 %v482, %v481
    %v492 = vpack.c.b16 %v484, %v483
    %501 = vmatprep.subr.bf16.mxu0 0
    %502 = vmatpush1.bf16.msra.mxu0 %v492
    %503 = vmatprep.subr.bf16.mxu0 0
    %504 = vmatpush1.bf16.msra.mxu0 %v491
    %505 = vmatprep.subr.bf16.mxu0 0
    %506 = vmatpush1.bf16.msra.mxu0 %v490
    %507 = vmatprep.subr.bf16.mxu0 0
    %508 = vmatpush1.bf16.msra.mxu0 %v489
    %509 = vmatprep.subr.bf16.mxu0 0
    %510 = vmatpush1.bf16.msra.mxu0 %v488
    %511 = vmatprep.subr.bf16.mxu0 0
    %512 = vmatpush1.bf16.msra.mxu0 %v487
    %513 = vmatprep.subr.bf16.mxu0 0
    %514 = vmatpush1.bf16.msra.mxu0 %v486
    %515 = vmatprep.subr.bf16.mxu0 0
    %516 = vmatpush1.bf16.msra.mxu0 %v485
    %517 = vmatprep.subr.bf16.mxu0 0
    %518 = vmatpush2.bf16.msra.mxu0 0
    %519 = vmatprep.subr.bf16.mxu0 0
    %520 = vmatpush2.bf16.msra.mxu0 0
    %521 = vmatprep.subr.bf16.mxu0 0
    %522 = vmatpush2.bf16.msra.mxu0 0
    %523 = vmatprep.subr.bf16.mxu0 0
    %524 = vmatpush2.bf16.msra.mxu0 0
    %525 = vmatprep.subr.bf16.mxu0 0
    %526 = vmatpush2.bf16.msra.mxu0 0
    %527 = vmatprep.subr.bf16.mxu0 0
    %528 = vmatpush2.bf16.msra.mxu0 0
    %529 = vmatprep.subr.bf16.mxu0 0
    %530 = vmatpush2.bf16.msra.mxu0 0
    %531 = vmatprep.subr.bf16.mxu0 0
    %532 = vmatpush2.bf16.msra.mxu0 0
    %533 = vmatprep.mubr.bf16.mxu0 0
    %534 = vmatmul.mubr.bf16.gmra.mxu0 %v448
    %v535 = vpop.f32.mrf.mxu0
    %v536 = vadd.f32 %v452, %v535
    %v537 = vpop.f32.mrf.mxu0
    %v538 = vpop.f32.mrf.mxu0
    %v539 = vadd.f32 %v452, %v538
    %v540 = vpop.f32.mrf.mxu0
    %541 = vdwg.mxu0
    %v542 = vtanh.pop %v536
    %v543 = vtanh.pop %v539
    %v544 = vpack.c.bf16 %v543, %v542
    %v545 = vlaneseq
    %v546 = vshrl.u32 %v545, 7
    %v547 = vsub.s32 2, %v546
    %v548 = vrot.slane %v143, %v547
    %v565 = vunpack.c.l.b16 %v127
    %v566 = vunpack.c.l.b16 %v128
    %v567 = vunpack.c.l.b16 %v129
    %v568 = vunpack.c.l.b16 %v130
    %v569 = vunpack.c.l.b16 %v131
    %v570 = vunpack.c.l.b16 %v132
    %v571 = vunpack.c.l.b16 %v133
    %v572 = vunpack.c.l.b16 %v134
    %v573 = vunpack.c.l.b16 %v135
    %v574 = vunpack.c.l.b16 %v136
    %v575 = vunpack.c.l.b16 %v137
    %v576 = vunpack.c.l.b16 %v138
    %v577 = vunpack.c.l.b16 %v139
    %v578 = vunpack.c.l.b16 %v140
    %v579 = vunpack.c.l.b16 %v141
    %v580 = vunpack.c.l.b16 %v142
    %v581 = vpack.c.b16 %v566, %v565
    %v582 = vpack.c.b16 %v568, %v567
    %v583 = vpack.c.b16 %v570, %v569
    %v584 = vpack.c.b16 %v572, %v571
    %v585 = vpack.c.b16 %v574, %v573
    %v586 = vpack.c.b16 %v576, %v575
    %v587 = vpack.c.b16 %v578, %v577
    %v588 = vpack.c.b16 %v580, %v579
    %597 = vmatprep.subr.bf16.mxu0 0
    %598 = vmatpush1.bf16.msra.mxu0 %v588
    %599 = vmatprep.subr.bf16.mxu0 0
    %600 = vmatpush1.bf16.msra.mxu0 %v587
    %601 = vmatprep.subr.bf16.mxu0 0
    %602 = vmatpush1.bf16.msra.mxu0 %v586
    %603 = vmatprep.subr.bf16.mxu0 0
    %604 = vmatpush1.bf16.msra.mxu0 %v585
    %605 = vmatprep.subr.bf16.mxu0 0
    %606 = vmatpush1.bf16.msra.mxu0 %v584
    %607 = vmatprep.subr.bf16.mxu0 0
    %608 = vmatpush1.bf16.msra.mxu0 %v583
    %609 = vmatprep.subr.bf16.mxu0 0
    %610 = vmatpush1.bf16.msra.mxu0 %v582
    %611 = vmatprep.subr.bf16.mxu0 0
    %612 = vmatpush1.bf16.msra.mxu0 %v581
    %613 = vmatprep.subr.bf16.mxu0 0
    %614 = vmatpush2.bf16.msra.mxu0 0
    %615 = vmatprep.subr.bf16.mxu0 0
    %616 = vmatpush2.bf16.msra.mxu0 0
    %617 = vmatprep.subr.bf16.mxu0 0
    %618 = vmatpush2.bf16.msra.mxu0 0
    %619 = vmatprep.subr.bf16.mxu0 0
    %620 = vmatpush2.bf16.msra.mxu0 0
    %621 = vmatprep.subr.bf16.mxu0 0
    %622 = vmatpush2.bf16.msra.mxu0 0
    %623 = vmatprep.subr.bf16.mxu0 0
    %624 = vmatpush2.bf16.msra.mxu0 0
    %625 = vmatprep.subr.bf16.mxu0 0
    %626 = vmatpush2.bf16.msra.mxu0 0
    %627 = vmatprep.subr.bf16.mxu0 0
    %628 = vmatpush2.bf16.msra.mxu0 0
    %629 = vmatprep.mubr.bf16.mxu0 0
    %630 = vmatmul.mubr.bf16.gmra.mxu0 %v544
    %v631 = vpop.f32.mrf.mxu0
    %v632 = vadd.f32 %v548, %v631
    %v633 = vpop.f32.mrf.mxu0
    %v634 = vpop.f32.mrf.mxu0
    %v635 = vadd.f32 %v548, %v634
    %v636 = vpop.f32.mrf.mxu0
    %637 = vdwg.mxu0
    %v638 = vtanh.pop %v632
    %v639 = vtanh.pop %v635
    %640 = vrot.lane.b32.xlu0 %v632, 126
    %v641 = vpop.permute.xlu0 %640
    %642 = vrot.lane.b32.xlu0 %v635, 126
    %v643 = vpop.permute.xlu0 %642
    %v644 = vmul.f32 %v641, 1.442695
    %v645 = vpow.pop %v644
    %v646 = vmul.f32 %v643, 1.442695
    %v647 = vpow.pop %v646
    %v648 = vlaneseq
    %v649 = vand.u32 %v648, 127
    %vm650 = vcmp.lt.s32.totalorder %v649, 2
    %v651 = vld [vmem:[%s1] sm:$0xff]
    %v652 = vld [vmem:[%s1 + $0x8] sm:$0xff]
    %vm653 = vcmp.eq.s32.totalorder %v649, 0
    %655 = vset.pattern.permute.xlu0 0
    %656 = vperm.xlu0 %655, %v651
    %v657 = vpop.permute.xlu0 %656
    %660 = vset.pattern.permute.xlu0 0
    %661 = vperm.xlu0 %660, %v652
    %v662 = vpop.permute.xlu0 %661
    %v664 = vsel %vm653, %v657, 0.0
    %v665 = vsel %vm653, %v662, 0.0
    %vm666 = vcmp.eq.s32.totalorder %v649, 1
    %667 = vset.pattern.permute.xlu0 1
    %668 = vperm.xlu0 %667, %v651
    %v669 = vpop.permute.xlu0 %668
    %671 = vset.pattern.permute.xlu0 1
    %672 = vperm.xlu0 %671, %v652
    %v673 = vpop.permute.xlu0 %672
    %v675 = vsel %vm666, %v669, 0.0
    %v676 = vsel %vm666, %v673, 0.0
    %v677 = vadd.f32 %v664, %v675
    %v678 = vadd.f32 %v665, %v676
    %v679 = vmul.f32 %v645, %v677
    %v680 = vmul.f32 %v647, %v678
    %v681 = vadd.f32 %v638, %v679
    %v682 = vadd.f32 %v639, %v680
    %v683 = vtanh.pop %v681
    %v684 = vtanh.pop %v682
    %v685 = vmul.f32 %v677, -0.5
    %v686 = vmul.f32 %v678, -0.5
    %v687 = vmul.f32 %v685, %v677
    %v688 = vmul.f32 %v686, %v678
    %v689 = vsub.f32 %v687, %v641
    %v690 = vsub.f32 %v688, %v643
    %v691 = vsub.f32 %v689, 0.9189385
    %v692 = vsub.f32 %v690, 0.9189385
    %v693 = vsel %vm650, %v691, 0.0
    %v694 = vsel %vm650, %v692, 0.0
    %v695 = vadd.f32 %v641, 1.4189385
    %v696 = vadd.f32 %v643, 1.4189385
    %v697 = vsel %vm650, %v695, 0.0
    %v698 = vsel %vm650, %v696, 0.0
    %699 = vadd.xlane.f32.xlu0 %v693
    %v700 = vpop.xlane.xlu0 %699
    %701 = vadd.xlane.f32.xlu0 %v694
    %v702 = vpop.xlane.xlu0 %701
    %703 = vadd.xlane.f32.xlu0 %v697
    %v704 = vpop.xlane.xlu0 %703
    %705 = vadd.xlane.f32.xlu0 %v698
    %v706 = vpop.xlane.xlu0 %705
    %v707 = vsel %vm650, %v638, 0.0
    %v708 = vsel %vm650, %v639, 0.0
    %709 = vrot.lane.b32.xlu0 %v707, 4
    %v710 = vpop.permute.xlu0 %709
    %711 = vrot.lane.b32.xlu0 %v708, 4
    %v712 = vpop.permute.xlu0 %711
    %v713 = vsel %vm650, %v683, 0.0
    %v714 = vsel %vm650, %v684, 0.0
    %vm715 = vcmp.eq.s32.totalorder %v649, 2
    %v716 = vsel %vm715, %v700, 0.0
    %v717 = vsel %vm715, %v702, 0.0
    %v718 = vadd.f32 %v713, %v716
    %v719 = vadd.f32 %v714, %v717
    %vm720 = vcmp.eq.s32.totalorder %v649, 3
    %v721 = vsel %vm720, %v704, 0.0
    %v722 = vsel %vm720, %v706, 0.0
    %v723 = vadd.f32 %v718, %v721
    %v724 = vadd.f32 %v719, %v722
    %v725 = vadd.f32 %v723, %v710
    %v726 = vadd.f32 %v724, %v712
    %727 = vst [vmem:[#allocation7] sm:$0xff] %v725
    %728 = vst [vmem:[#allocation7 + $0x8] sm:$0xff] %v726
    // Predicated region
    $region26: #{tpu_custom_call.1} parent=1 // pred_check
      _
    $region27: #{tpu_custom_call.1} parent=1 // pred_check_branch
      %730 = sbr.rel (0) target = $region29
    $region28: #{tpu_custom_call.1} parent=1 // pred_region
      %s732 = ssub.s32 256, 256
      %733 = vsyncadd [#allocation4], %s732
      %s734 = sshll.u32 [#allocation7], 4
      %s735 = int_to_ptr.vmem [resolvable:$true] %s734
      %740 = dma.vmem_to_hbm [thread:$0]  %s735, 256, %s4, [#allocation4], 128, 128, 8
    $region29: #{tpu_custom_call.1} parent=1 // pred_fallthru
      _
    // Predicated region
    $region30: #{tpu_custom_call.1} parent=1 // pred_check
      _
    $region31: #{tpu_custom_call.1} parent=1 // pred_check_branch
      %742 = sbr.rel (0) target = $region33
    $region32: #{tpu_custom_call.1} parent=1 // pred_region
      %743 = dma.done [#allocation4], 256
    $region33: #{tpu_custom_call.1} parent=1 // pred_fallthru
      _
    %744 = vsyncpa [#allocation3], 1
    %745 = vsyncpa [#allocation6], 1
    %746 = vsyncpa [#allocation4], 1

</llo_original>
